<compile_context>
chip_gen: v7x
topology: tpu7x:2x2x1
jax: 0.10.0
libtpu: 0.0.40
codegen_flags: <defaults>
</compile_context>

<pallas_src>
import jax
import jax.numpy as jnp
from jax.experimental import pallas as pl
from jax.experimental.pallas import tpu as pltpu

EPS = 1e-5  # PyTorch BatchNorm2d default


def _round_up(x, m):
    return ((x + m - 1) // m) * m


def conv_stats_kernel(p_ref, w_ref, b_ref, y_ref, stat_ref):
    """Pass 1: 3x3 conv as one MXU matmul per batch element (channel-major
    output), plus per-channel (sum, sum-of-squares) partials for BN.

    p_ref   : (b_blk, K_pad, HW)  im2col patches (row = kh,kw,ci), bf16
    w_ref   : (C_pad, K_pad)      merged conv weight, bf16
    b_ref   : (C_pad, 1)          conv bias, f32
    y_ref   : (b_blk, C_pad, HW)  conv output (lane-dense HW), bf16
    stat_ref: (1, C_pad, 2)       col 0 = sum, col 1 = sum of squares, f32
    """
    b_blk = p_ref.shape[0]
    w = w_ref[...]
    bias = b_ref[...]

    ssum = None
    ssq = None
    for b in range(b_blk):  # static unroll; b_blk is small
        acc = jnp.dot(w, p_ref[b], preferred_element_type=jnp.float32)
        acc = acc + bias                                   # (C_pad, HW), f32
        y_ref[b] = acc.astype(y_ref.dtype)
        s1 = jnp.sum(acc, axis=1, keepdims=True)           # (C_pad, 1)
        s2 = jnp.sum(acc * acc, axis=1, keepdims=True)
        ssum = s1 if ssum is None else ssum + s1
        ssq = s2 if ssq is None else ssq + s2

    stat_ref[0] = jnp.concatenate([ssum, ssq], axis=1)     # (C_pad, 2)


def bn_relu_kernel(y_ref, scale_ref, shift_ref, o_ref):
    """Pass 2: per-channel FMA (pre-folded scale/shift) + ReLU, f32 epilogue.

    y_ref    : (b_blk, C_pad, HW)  conv output block, bf16
    scale_ref: (C_pad, 1)          gamma / sqrt(var + eps), f32
    shift_ref: (C_pad, 1)          beta - mean * scale, f32
    o_ref    : (b_blk, C_pad, HW)  output block, f32
    """
    y = y_ref[...].astype(jnp.float32)
    o_ref[...] = jnp.maximum(y * scale_ref[...] + shift_ref[...], 0.0)


def conv_batch_norm(x_nchw, w_oihw, bias, gamma, beta, *, b_blk=None):
    """Matches ConvBatchNorm.forward (training-mode BN): x NCHW -> out NCHW."""
    N, Cin, H, W = x_nchw.shape
    Cout = w_oihw.shape[0]
    HW = H * W
    K = 9 * Cin
    K_pad = _round_up(K, 128)        # lane-aligned contraction dim for the MXU
    C_pad = _round_up(Cout, 16)      # bf16-friendly sublane pad only (not 128)

    if b_blk is None:
        # Amortize per-grid-step overhead for larger batches but keep at least
        # two grid steps so both v7x TensorCores get work.
        b_blk = 1
        for cand in (4, 2):
            if N % cand == 0 and N // cand >= 2:
                b_blk = cand
                break
    assert N % b_blk == 0
    n_blocks = N // b_blk

    # ---- wrapper-side layout glue (XLA): im2col directly from NCHW ----------
    # TODO(synk): for very large H*W, tile the spatial axis with halo rows
    # instead of materializing full (K_pad, HW) slabs per batch element.
    x_pad = jnp.pad(x_nchw, ((0, 0), (0, 0), (1, 1), (1, 1)))     # (N,Cin,H+2,W+2)
    taps = [x_pad[:, :, kh:kh + H, kw:kw + W].reshape(N, Cin, HW)
            for kh in range(3) for kw in range(3)]
    patches = jnp.concatenate(taps, axis=1)                       # (N, 9*Cin, HW)
    patches = jnp.pad(patches, ((0, 0), (0, K_pad - K), (0, 0)))  # zero K pad
    patches = patches.astype(jnp.bfloat16)

    # OIHW -> (co, kh, kw, ci) -> (Cout, 9*Cin): column order matches patches.
    w_mat = jnp.transpose(w_oihw, (0, 2, 3, 1)).reshape(Cout, K)
    w_mat = jnp.pad(w_mat, ((0, C_pad - Cout), (0, K_pad - K))).astype(jnp.bfloat16)

    b_p = jnp.pad(bias.astype(jnp.float32), (0, C_pad - Cout)).reshape(C_pad, 1)
    g_p = jnp.pad(gamma.astype(jnp.float32), (0, C_pad - Cout))
    be_p = jnp.pad(beta.astype(jnp.float32), (0, C_pad - Cout))

    cparams = pltpu.CompilerParams(
        dimension_semantics=("parallel",),        # megacore over the batch grid
    )

    # ---- pass 1: conv (one matmul per batch element) + BN partials ----------
    conv_out, stats = pl.pallas_call(
        conv_stats_kernel,
        out_shape=(
            jax.ShapeDtypeStruct((N, C_pad, HW), jnp.bfloat16),
            jax.ShapeDtypeStruct((n_blocks, C_pad, 2), jnp.float32),
        ),
        grid_spec=pltpu.PrefetchScalarGridSpec(
            num_scalar_prefetch=0,
            grid=(n_blocks,),
            in_specs=[
                pl.BlockSpec((b_blk, K_pad, HW), lambda n: (n, 0, 0)),
                pl.BlockSpec((C_pad, K_pad), lambda n: (0, 0)),
                pl.BlockSpec((C_pad, 1), lambda n: (0, 0)),
            ],
            out_specs=[
                pl.BlockSpec((b_blk, C_pad, HW), lambda n: (n, 0, 0)),
                pl.BlockSpec((1, C_pad, 2), lambda n: (n, 0, 0)),
            ],
        ),
        compiler_params=cparams,
    )(patches, w_mat, b_p)

    # ---- tiny global combine (plain jnp): fold stats into scale/shift -------
    inv_count = 1.0 / float(N * HW)
    total = jnp.sum(stats, axis=0)                       # (C_pad, 2)
    mean = total[:, 0] * inv_count
    ex2 = total[:, 1] * inv_count
    var = jnp.maximum(ex2 - mean * mean, 0.0)            # biased variance
    scale = g_p * jax.lax.rsqrt(var + EPS)               # gamma / sqrt(var+eps)
    shift = be_p - mean * scale
    scale = scale.reshape(C_pad, 1)
    shift = shift.reshape(C_pad, 1)

    # ---- pass 2: FMA + ReLU sweep --------------------------------------------
    out_flat = pl.pallas_call(
        bn_relu_kernel,
        out_shape=jax.ShapeDtypeStruct((N, C_pad, HW), jnp.float32),
        grid_spec=pltpu.PrefetchScalarGridSpec(
            num_scalar_prefetch=0,
            grid=(n_blocks,),
            in_specs=[
                pl.BlockSpec((b_blk, C_pad, HW), lambda n: (n, 0, 0)),
                pl.BlockSpec((C_pad, 1), lambda n: (0, 0)),
                pl.BlockSpec((C_pad, 1), lambda n: (0, 0)),
            ],
            out_specs=pl.BlockSpec((b_blk, C_pad, HW), lambda n: (n, 0, 0)),
        ),
        compiler_params=cparams,
    )(conv_out, scale, shift)

    # Already channel-major (NCHW): just reshape + drop padded channels.
    return out_flat.reshape(N, C_pad, H, W)[:, :Cout]


def reference(x_nchw, w_oihw, bias, gamma, beta):
    """Pure-JAX f32 reference of the PyTorch module (training-mode BN)."""
    y = jax.lax.conv_general_dilated(
        x_nchw, w_oihw, window_strides=(1, 1), padding="SAME",
        dimension_numbers=("NCHW", "OIHW", "NCHW"))
    y = y + bias[None, :, None, None]
    mean = y.mean(axis=(0, 2, 3), keepdims=True)
    var = ((y - mean) ** 2).mean(axis=(0, 2, 3), keepdims=True)
    yn = (y - mean) / jnp.sqrt(var + EPS)
    yn = yn * gamma[None, :, None, None] + beta[None, :, None, None]
    return jnp.maximum(yn, 0.0)


if __name__ == "__main__":
    key = jax.random.PRNGKey(0)
    k_x, k_w, k_b, k_g, k_be = jax.random.split(key, 5)

    N, Cin, H, W = 2, 4, 16, 16
    Cout = 8

    x = jax.random.normal(k_x, (N, Cin, H, W), jnp.float32)
    w = jax.random.normal(k_w, (Cout, Cin, 3, 3), jnp.float32) * 0.1
    b = jax.random.normal(k_b, (Cout,), jnp.float32) * 0.1
    gamma = 1.0 + 0.1 * jax.random.normal(k_g, (Cout,), jnp.float32)
    beta = 0.1 * jax.random.normal(k_be, (Cout,), jnp.float32)

    out = conv_batch_norm(x, w, b, gamma, beta)
    out = jax.block_until_ready(out)

    ref = reference(x, w, b, gamma, beta)
    assert out.shape == (N, Cout, H, W)
    # Tolerance sized for bf16 MXU operands / bf16 intermediate (f32 stats).
    assert jnp.allclose(out, ref, atol=5e-2, rtol=5e-2), (
        float(jnp.max(jnp.abs(out - ref))))

    print("KERNEL_OK")
</pallas_src>

<mosaic_0001>
module attributes {stable_mosaic.version = 11 : i64} {
  func.func @conv_stats_kernel(%arg0: i32, %arg1: memref<1x128x256xbf16, #tpu.memory_space<vmem>>, %arg2: memref<16x128xbf16, #tpu.memory_space<vmem>>, %arg3: memref<16x1xf32, #tpu.memory_space<vmem>>, %arg4: memref<1x16x256xbf16, #tpu.memory_space<vmem>>, %arg5: memref<1x16x2xf32, #tpu.memory_space<vmem>>) attributes {dimension_semantics = [#tpu.dimension_semantics<parallel>], iteration_bounds = array<i64: 2>, scalar_prefetch = 0 : i64, scratch_operands = 0 : i64, tpu.core_type = #tpu.core_type<tc>, window_params = [{transform_indices = @transform_0, window_bounds = array<i64: 1, 128, 256>}, {pipeline_mode = #tpu.pipeline_mode<synchronous>, transform_indices = @transform_1, window_bounds = array<i64: 16, 128>}, {pipeline_mode = #tpu.pipeline_mode<synchronous>, transform_indices = @transform_2, window_bounds = array<i64: 16, 1>}, {transform_indices = @transform_3, window_bounds = array<i64: 1, 16, 256>}, {transform_indices = @transform_4, window_bounds = array<i64: 1, 16, 2>}]} {
    %c0 = arith.constant 0 : index
    %c0_0 = arith.constant 0 : index
    %0 = vector.load %arg2[%c0, %c0_0] : memref<16x128xbf16, #tpu.memory_space<vmem>>, vector<16x128xbf16>
    %c0_1 = arith.constant 0 : index
    %c0_2 = arith.constant 0 : index
    %1 = vector.load %arg3[%c0_1, %c0_2] : memref<16x1xf32, #tpu.memory_space<vmem>>, vector<16x1xf32>
    %c0_3 = arith.constant 0 : index
    %c0_4 = arith.constant 0 : index
    %c0_5 = arith.constant 0 : index
    %2 = vector.load %arg1[%c0_3, %c0_4, %c0_5] : memref<1x128x256xbf16, #tpu.memory_space<vmem>>, vector<1x128x256xbf16>
    %3 = vector.shape_cast %2 : vector<1x128x256xbf16> to vector<128x256xbf16>
    %cst = arith.constant dense<0.000000e+00> : vector<16x256xf32>
    %4 = tpu.matmul %0, %3, %cst {dimension_numbers = #tpu.dot_dimension_numbers<[1], [0], [0], [1], [0, 0, 1, 1], [], []>} : vector<16x128xbf16>, vector<128x256xbf16>, vector<16x256xf32> -> vector<16x256xf32>
    %5 = vector.broadcast %1 : vector<16x1xf32> to vector<16x256xf32>
    %6 = arith.addf %4, %5 : vector<16x256xf32>
    %7 = arith.truncf %6 : vector<16x256xf32> to vector<16x256xbf16>
    %c0_6 = arith.constant 0 : index
    %c0_7 = arith.constant 0 : index
    %c0_8 = arith.constant 0 : index
    %8 = vector.load %arg4[%c0_6, %c0_7, %c0_8] : memref<1x16x256xbf16, #tpu.memory_space<vmem>>, vector<1x16x256xbf16>
    %9 = vector.shape_cast %8 : vector<1x16x256xbf16> to vector<16x256xbf16>
    %10 = vector.shape_cast %7 : vector<16x256xbf16> to vector<1x16x256xbf16>
    tpu.vector_store %arg4[%c0_6, %c0_7, %c0_8], %10 {strides = array<i32>} : memref<1x16x256xbf16, #tpu.memory_space<vmem>>, vector<1x16x256xbf16>,
    %cst_9 = arith.constant dense<0.000000e+00> : vector<16xf32>
    %11 = vector.multi_reduction <add>, %6, %cst_9 [1] : vector<16x256xf32> to vector<16xf32>
    %12 = vector.shape_cast %11 : vector<16xf32> to vector<16x1xf32>
    %13 = arith.mulf %6, %6 : vector<16x256xf32>
    %cst_10 = arith.constant dense<0.000000e+00> : vector<16xf32>
    %14 = vector.multi_reduction <add>, %13, %cst_10 [1] : vector<16x256xf32> to vector<16xf32>
    %15 = vector.shape_cast %14 : vector<16xf32> to vector<16x1xf32>
    %16 = tpu.concatenate %12, %15 in 1 : vector<16x1xf32>, vector<16x1xf32> -> vector<16x2xf32>
    %c0_11 = arith.constant 0 : index
    %c0_12 = arith.constant 0 : index
    %c0_13 = arith.constant 0 : index
    %17 = vector.load %arg5[%c0_11, %c0_12, %c0_13] : memref<1x16x2xf32, #tpu.memory_space<vmem>>, vector<1x16x2xf32>
    %18 = vector.shape_cast %17 : vector<1x16x2xf32> to vector<16x2xf32>
    %19 = vector.shape_cast %16 : vector<16x2xf32> to vector<1x16x2xf32>
    tpu.vector_store %arg5[%c0_11, %c0_12, %c0_13], %19 {strides = array<i32>} : memref<1x16x2xf32, #tpu.memory_space<vmem>>, vector<1x16x2xf32>,
    return
  }
  func.func @transform_0(%arg0: i32) -> (i32, i32, i32) {
    %c0_i32 = arith.constant 0 : i32
    %c0_i32_0 = arith.constant 0 : i32
    %c0_i32_1 = arith.constant 0 : i32
    return %arg0, %c0_i32, %c0_i32_0 : i32, i32, i32
  }
  func.func @transform_1(%arg0: i32) -> (i32, i32) {
    %c0_i32 = arith.constant 0 : i32
    %c0_i32_0 = arith.constant 0 : i32
    %c0_i32_1 = arith.constant 0 : i32
    return %c0_i32, %c0_i32_0 : i32, i32
  }
  func.func @transform_2(%arg0: i32) -> (i32, i32) {
    %c0_i32 = arith.constant 0 : i32
    %c0_i32_0 = arith.constant 0 : i32
    %c0_i32_1 = arith.constant 0 : i32
    return %c0_i32, %c0_i32_0 : i32, i32
  }
  func.func @transform_3(%arg0: i32) -> (i32, i32, i32) {
    %c0_i32 = arith.constant 0 : i32
    %c0_i32_0 = arith.constant 0 : i32
    %c0_i32_1 = arith.constant 0 : i32
    return %arg0, %c0_i32, %c0_i32_0 : i32, i32, i32
  }
  func.func @transform_4(%arg0: i32) -> (i32, i32, i32) {
    %c0_i32 = arith.constant 0 : i32
    %c0_i32_0 = arith.constant 0 : i32
    %c0_i32_1 = arith.constant 0 : i32
    return %arg0, %c0_i32, %c0_i32_0 : i32, i32, i32
  }
}

</mosaic_0001>

<llo_original>
// kernel: tpu_custom_call.1
$region0: #{tpu_custom_call.1}
  #allocation0 [shape = 'u32[]', space=smem, size = 0x4, offset = 0x4, fixed_abs, tag = 'smem constant byte address 0x4 - core index']
  #allocation1 [shape = 'u32[144,128]{1,0:T(1,128)}', space=vmem, size = 0x12000, scoped, tag = 'internal scratch']
  %s0 = inlined_call_operand.hbm [shape: bf16[2,128,256], index: 0, kind: input, shape index: {}]
  %s1 = inlined_call_operand.vmem [shape: bf16[16,128], index: 1, kind: input, shape index: {}]
  %s2 = inlined_call_operand.vmem [shape: f32[16,1], index: 2, kind: input, shape index: {}]
  %s3 = inlined_call_operand.hbm [shape: bf16[2,16,256], index: 3, kind: output, shape index: {0}]
  %s4 = inlined_call_operand.vmem [shape: f32[2,16,2], index: 4, kind: output, shape index: {1}]
  %5 = xla_tuple %s3, %s4
  %s6 = sld [smem:[#allocation0]]
  $region57: #{tpu_custom_call.1} parent=0
    _
  %s8 = ssub.s32 1, %s6
  %s9 = scalar_select 0, %s8, %s6
  $region1: #{tpu_custom_call.1} parent=0
    #allocation2 [shape = 'u8[131072]{0}', space=vmem, size = 0x20000, scoped, tag = 'input window, operand 0']
    #allocation3 [shape = 's32[2]{0}', space=sflag, size = 0x8, scoped, tag = 'scoped memory for tpu_custom_call.1']
    #allocation4 [shape = 's32[2]{0}', space=sflag, size = 0x8, scoped, tag = 'scoped memory for tpu_custom_call.1']
    #allocation5 [shape = 'u8[16384]{0}', space=vmem, size = 0x4000, scoped, tag = 'output window, operand 0']
    %10 = vsyncpa [#allocation3], 0
    %s11 = scalar_lea.sflag [#allocation3], 1
    %12 = vsyncpa %s11, 0
    %13 = vsyncpa [#allocation4], 0
    %s14 = scalar_lea.sflag [#allocation4], 1
    %15 = vsyncpa %s14, 0
    loop: start=0, step=1, limit=4
    $region2: #{tpu_custom_call.1} parent=1 // loop_pre_header
      _
    $region3: #{tpu_custom_call.1} parent=1 // loop_header
      %s17 = sphi 0, %s21
      %p18 = scmp.ge.s32.totalorder %s17, 4
      %s27 = sphi 0, %s29
      %s30 = sphi 0, %s27
      %s31 = sphi 0, %s30
      %s47 = sphi 0, %s31
      %s51 = sphi 0, %s51
      %s53 = sphi 0, %s51
      %s54 = sphi 0, %s53
      %s68 = sphi 0, %s54
      %s72 = sphi 0, %s72
      %s74 = sphi 0, %s72
      %s75 = sphi 0, %s74
      %s89 = sphi 0, %s75
      %s95 = sphi 0, %s97
      %s98 = sphi 0, %s95
      %s99 = sphi 0, %s98
      %s115 = sphi 0, %s99
      %s121 = sphi 0, %s123
      %s124 = sphi 0, %s121
      %s125 = sphi 0, %s124
      %s141 = sphi 0, %s125
    $region4: #{tpu_custom_call.1} parent=1 // loop_header_branch
      %20 = sbr.rel (%p18) target = $region8
    $region5: #{tpu_custom_call.1} parent=1 // loop_body
      %s22 = ssub.s32 %s17, 1
      %s23 = ssub.s32 %s17, 2
      %s24 = sadd.s32 %s17, 1
      %s25 = ssub.s32 %s17, %s24
      %p26 = scmp.eq.s32.totalorder %s25, 0
      %s28 = sadd.s32 %s27, 1
      %s29 = scalar_select %p26, %s27, %s28
      %p32 = pneg %p26
      %p33 = scmp.eq.s32.totalorder %s17, 1
      %p34 = por %p32, %p33
      %p35 = scmp.ne.s32.totalorder %s27, %s30
      %p36 = scmp.eq.s32.totalorder %s17, 0
      %p37 = por %p35, %p36
      %p38 = scmp.ne.s32.totalorder %s27, %s30
      %p39 = scmp.eq.s32.totalorder %s22, 1
      %p40 = por %p38, %p39
      %p41 = scmp.ne.s32.totalorder %s30, %s31
      %p42 = scmp.eq.s32.totalorder %s22, 0
      %p43 = por %p41, %p42
      %p44 = scmp.ne.s32.totalorder %s30, %s31
      %p45 = scmp.eq.s32.totalorder %s23, 1
      %p46 = por %p44, %p45
      %p48 = scmp.ne.s32.totalorder %s31, %s47
      %p49 = scmp.eq.s32.totalorder %s23, 0
      %p50 = por %p48, %p49
      %s52 = sadd.s32 %s51, 1
      %p55 = scmp.eq.s32.totalorder %s17, 1
      %p56 = scmp.ne.s32.totalorder %s51, %s53
      %p57 = scmp.eq.s32.totalorder %s17, 0
      %p58 = por %p56, %p57
      %p59 = scmp.ne.s32.totalorder %s51, %s53
      %p60 = scmp.eq.s32.totalorder %s22, 1
      %p61 = por %p59, %p60
      %p62 = scmp.ne.s32.totalorder %s53, %s54
      %p63 = scmp.eq.s32.totalorder %s22, 0
      %p64 = por %p62, %p63
      %p65 = scmp.ne.s32.totalorder %s53, %s54
      %p66 = scmp.eq.s32.totalorder %s23, 1
      %p67 = por %p65, %p66
      %p69 = scmp.ne.s32.totalorder %s54, %s68
      %p70 = scmp.eq.s32.totalorder %s23, 0
      %p71 = por %p69, %p70
      %s73 = sadd.s32 %s72, 1
      %p76 = scmp.eq.s32.totalorder %s17, 1
      %p77 = scmp.ne.s32.totalorder %s72, %s74
      %p78 = scmp.eq.s32.totalorder %s17, 0
      %p79 = por %p77, %p78
      %p80 = scmp.ne.s32.totalorder %s72, %s74
      %p81 = scmp.eq.s32.totalorder %s22, 1
      %p82 = por %p80, %p81
      %p83 = scmp.ne.s32.totalorder %s74, %s75
      %p84 = scmp.eq.s32.totalorder %s22, 0
      %p85 = por %p83, %p84
      %p86 = scmp.ne.s32.totalorder %s74, %s75
      %p87 = scmp.eq.s32.totalorder %s23, 1
      %p88 = por %p86, %p87
      %p90 = scmp.ne.s32.totalorder %s75, %s89
      %p91 = scmp.eq.s32.totalorder %s23, 0
      %p92 = por %p90, %p91
      %s93 = ssub.s32 %s17, %s24
      %p94 = scmp.eq.s32.totalorder %s93, 0
      %s96 = sadd.s32 %s95, 1
      %s97 = scalar_select %p94, %s95, %s96
      %p100 = pneg %p94
      %p101 = scmp.eq.s32.totalorder %s17, 1
      %p102 = por %p100, %p101
      %p103 = scmp.ne.s32.totalorder %s95, %s98
      %p104 = scmp.eq.s32.totalorder %s17, 0
      %p105 = por %p103, %p104
      %p106 = scmp.ne.s32.totalorder %s95, %s98
      %p107 = scmp.eq.s32.totalorder %s22, 1
      %p108 = por %p106, %p107
      %p109 = scmp.ne.s32.totalorder %s98, %s99
      %p110 = scmp.eq.s32.totalorder %s22, 0
      %p111 = por %p109, %p110
      %p112 = scmp.ne.s32.totalorder %s98, %s99
      %p113 = scmp.eq.s32.totalorder %s23, 1
      %p114 = por %p112, %p113
      %p116 = scmp.ne.s32.totalorder %s99, %s115
      %p117 = scmp.eq.s32.totalorder %s23, 0
      %p118 = por %p116, %p117
      %s119 = ssub.s32 %s17, %s24
      %p120 = scmp.eq.s32.totalorder %s119, 0
      %s122 = sadd.s32 %s121, 1
      %s123 = scalar_select %p120, %s121, %s122
      %p126 = pneg %p120
      %p127 = scmp.eq.s32.totalorder %s17, 1
      %p128 = por %p126, %p127
      %p129 = scmp.ne.s32.totalorder %s121, %s124
      %p130 = scmp.eq.s32.totalorder %s17, 0
      %p131 = por %p129, %p130
      %p132 = scmp.ne.s32.totalorder %s121, %s124
      %p133 = scmp.eq.s32.totalorder %s22, 1
      %p134 = por %p132, %p133
      %p135 = scmp.ne.s32.totalorder %s124, %s125
      %p136 = scmp.eq.s32.totalorder %s22, 0
      %p137 = por %p135, %p136
      %p138 = scmp.ne.s32.totalorder %s124, %s125
      %p139 = scmp.eq.s32.totalorder %s23, 1
      %p140 = por %p138, %p139
      %p142 = scmp.ne.s32.totalorder %s125, %s141
      %p143 = scmp.eq.s32.totalorder %s23, 0
      %p144 = por %p142, %p143
      %p145 = scmp.le.s32.totalorder 1, %s17
      %p146 = scmp.lt.s32.totalorder %s17, 3
      %p147 = pnand %p145, %p146
      %p148 = pneg %p147
      // Predicated region
      $region9: #{tpu_custom_call.1} parent=5 // pred_check
        _
      $region10: #{tpu_custom_call.1} parent=5 // pred_check_branch
        %150 = sbr.rel (%p147) target = $region12
      $region11: #{tpu_custom_call.1} parent=5 // pred_region
        %s151 = ssub.s32 %s17, 1
        // Predicated region
        $region13: #{tpu_custom_call.1} parent=11 // pred_check
          %p152 = pneg %p64
        $region14: #{tpu_custom_call.1} parent=11 // pred_check_branch
          %154 = sbr.rel (%p152) target = $region16
        $region15: #{tpu_custom_call.1} parent=11 // pred_region
          _
        $region16: #{tpu_custom_call.1} parent=11 // pred_fallthru
          _
        // Predicated region
        $region17: #{tpu_custom_call.1} parent=11 // pred_check
          %p155 = pneg %p85
        $region18: #{tpu_custom_call.1} parent=11 // pred_check_branch
          %157 = sbr.rel (%p155) target = $region20
        $region19: #{tpu_custom_call.1} parent=11 // pred_region
          _
        $region20: #{tpu_custom_call.1} parent=11 // pred_fallthru
          _
      $region12: #{tpu_custom_call.1} parent=5 // pred_fallthru
        _
      %p158 = scmp.lt.s32.totalorder %s17, 2
      // Predicated region
      $region21: #{tpu_custom_call.1} parent=5 // pred_check
        %p159 = pneg %p158
      $region22: #{tpu_custom_call.1} parent=5 // pred_check_branch
        %161 = sbr.rel (%p159) target = $region24
      $region23: #{tpu_custom_call.1} parent=5 // pred_region
        // Predicated region
        $region25: #{tpu_custom_call.1} parent=23 // pred_check
          %p162 = pneg %p37
        $region26: #{tpu_custom_call.1} parent=23 // pred_check_branch
          %164 = sbr.rel (%p162) target = $region28
        $region27: #{tpu_custom_call.1} parent=23 // pred_region
          %s165 = sand.u32 %s27, 1
          %s166 = scalar_lea.sflag [#allocation3], %s165
          %s167 = sand.u32 %s27, 1
          %s168 = smul.addr %s167, 128
          %s169 = scalar_lea.vmem [#allocation2], %s168
          %s171 = ssub.s32 2048, 2048
          %172 = vsyncadd %s166, %s171
          %s173 = smul.addr %s17, 32
          %s174 = smul.addr %s173, 64
          %s175 = scalar_lea.hbm %s0, %s174
          %s176 = sshll.u32 %s169, 4
          %s177 = int_to_ptr.vmem [resolvable:$true] %s176
          %182 = dma.hbm_to_vmem [thread:$0]  %s175, 2048, %s177, %s166, 128, 128, 8
        $region28: #{tpu_custom_call.1} parent=23 // pred_fallthru
          _
      $region24: #{tpu_custom_call.1} parent=5 // pred_fallthru
        _
      %p183 = scmp.le.s32.totalorder 1, %s17
      %p184 = scmp.lt.s32.totalorder %s17, 3
      %p185 = pnand %p183, %p184
      %p186 = pneg %p185
      // Predicated region
      $region29: #{tpu_custom_call.1} parent=5 // pred_check
        _
      $region30: #{tpu_custom_call.1} parent=5 // pred_check_branch
        %188 = sbr.rel (%p185) target = $region32
      $region31: #{tpu_custom_call.1} parent=5 // pred_region
        %s189 = ssub.s32 %s17, 1
        %s190 = sand.u32 %s30, 1
        %s191 = scalar_lea.sflag [#allocation3], %s190
        %s192 = sand.u32 %s30, 1
        %s193 = smul.addr %s192, 128
        %s194 = scalar_lea.vmem [#allocation2], %s193
        // Predicated region
        $region33: #{tpu_custom_call.1} parent=31 // pred_check
          %p195 = pneg %p43
        $region34: #{tpu_custom_call.1} parent=31 // pred_check_branch
          %197 = sbr.rel (%p195) target = $region36
        $region35: #{tpu_custom_call.1} parent=31 // pred_region
          %198 = dma.done %s191, 2048
        $region36: #{tpu_custom_call.1} parent=31 // pred_fallthru
          _
        %s199 = sand.u32 %s30, 1
        %s200 = scalar_lea.sflag [#allocation3], %s199
        %s201 = sand.u32 %s30, 1
        %s202 = smul.addr %s201, 128
        %s203 = scalar_lea.vmem [#allocation2], %s202
        %p204 = pneg %p43
        %p205 = pneg %p40
        %p206 = pneg %p64
        %p207 = pneg %p61
        %p208 = pneg %p85
        %p209 = pneg %p82
        %p210 = pneg %p111
        %p211 = pneg %p108
        %s212 = sand.u32 %s98, 1
        %s213 = scalar_lea.sflag [#allocation4], %s212
        %s214 = sand.u32 %s98, 1
        %s215 = smul.addr %s214, 16
        %s216 = scalar_lea.vmem [#allocation5], %s215
        %p217 = pneg %p137
        %p218 = pneg %p134
        %p219 = scmp.lt.s32.totalorder %s22, 1
        %s220 = scalar_select %p219, %s22, 1
        %s221 = smul.addr %s220, 2
        %s222 = smul.addr %s221, 8
        %s223 = scalar_lea.vmem %s4, %s222
        %p224 = scmp.lt.s32.totalorder %s22, 1
        %s225 = scalar_select %p224, %s22, 1
        %s226 = smul.addr %s225, 2
        %s227 = smul.addr %s226, 8
        %s228 = scalar_lea.vmem %s4, %s227
        %v230 = vld [vmem:[%s1] sm:$0xf]
        %v231 = vld [vmem:[%s1 + $0x4] sm:$0xf]
        %v232 = vld [vmem:[%s2] sm:$0xff]
        %v233 = vld [vmem:[%s2 + $0x8] sm:$0xff]
        %v234 = vld [vmem:[%s194] sm:$0xff]
        %v235 = vld [vmem:[%s194 + $0x8] sm:$0xff]
        %v236 = vld [vmem:[%s194 + $0x10] sm:$0xff]
        %v237 = vld [vmem:[%s194 + $0x18] sm:$0xff]
        %v238 = vld [vmem:[%s194 + $0x20] sm:$0xff]
        %v239 = vld [vmem:[%s194 + $0x28] sm:$0xff]
        %v240 = vld [vmem:[%s194 + $0x30] sm:$0xff]
        %v241 = vld [vmem:[%s194 + $0x38] sm:$0xff]
        %v242 = vld [vmem:[%s194 + $0x40] sm:$0xff]
        %v243 = vld [vmem:[%s194 + $0x48] sm:$0xff]
        %v244 = vld [vmem:[%s194 + $0x50] sm:$0xff]
        %v245 = vld [vmem:[%s194 + $0x58] sm:$0xff]
        %v246 = vld [vmem:[%s194 + $0x60] sm:$0xff]
        %v247 = vld [vmem:[%s194 + $0x68] sm:$0xff]
        %v248 = vld [vmem:[%s194 + $0x70] sm:$0xff]
        %v249 = vld [vmem:[%s194 + $0x78] sm:$0xff]
        %251 = vset.pattern.permute.xlu0 0
        %252 = vperm.xlu0 %251, %v232
        %v253 = vpop.permute.xlu0 %252
        %256 = vset.pattern.permute.xlu0 0
        %257 = vperm.xlu0 %256, %v233
        %v258 = vpop.permute.xlu0 %257
        %v262 = vunpack.c.l.b16 %v230
        %v263 = vunpack.c.l.b16 %v231
        %v264 = vpack.c.b16 %v263, %v262
        %v282 = vunpack.c.l.b16 %v234
        %v283 = vunpack.c.h.b16 %v234
        %v284 = vunpack.c.l.b16 %v235
        %v285 = vunpack.c.h.b16 %v235
        %v286 = vunpack.c.l.b16 %v236
        %v287 = vunpack.c.h.b16 %v236
        %v288 = vunpack.c.l.b16 %v237
        %v289 = vunpack.c.h.b16 %v237
        %v290 = vunpack.c.l.b16 %v238
        %v291 = vunpack.c.h.b16 %v238
        %v292 = vunpack.c.l.b16 %v239
        %v293 = vunpack.c.h.b16 %v239
        %v294 = vunpack.c.l.b16 %v240
        %v295 = vunpack.c.h.b16 %v240
        %v296 = vunpack.c.l.b16 %v241
        %v297 = vunpack.c.h.b16 %v241
        %v298 = vunpack.c.l.b16 %v242
        %v299 = vunpack.c.h.b16 %v242
        %v300 = vunpack.c.l.b16 %v243
        %v301 = vunpack.c.h.b16 %v243
        %v302 = vunpack.c.l.b16 %v244
        %v303 = vunpack.c.h.b16 %v244
        %v304 = vunpack.c.l.b16 %v245
        %v305 = vunpack.c.h.b16 %v245
        %v306 = vunpack.c.l.b16 %v246
        %v307 = vunpack.c.h.b16 %v246
        %v308 = vunpack.c.l.b16 %v247
        %v309 = vunpack.c.h.b16 %v247
        %v310 = vunpack.c.l.b16 %v248
        %v311 = vunpack.c.h.b16 %v248
        %v312 = vunpack.c.l.b16 %v249
        %v313 = vunpack.c.h.b16 %v249
        %v314 = vpack.c.b16 %v284, %v282
        %v315 = vpack.c.b16 %v285, %v283
        %v316 = vpack.c.b16 %v288, %v286
        %v317 = vpack.c.b16 %v289, %v287
        %v318 = vpack.c.b16 %v292, %v290
        %v319 = vpack.c.b16 %v293, %v291
        %v320 = vpack.c.b16 %v296, %v294
        %v321 = vpack.c.b16 %v297, %v295
        %v322 = vpack.c.b16 %v300, %v298
        %v323 = vpack.c.b16 %v301, %v299
        %v324 = vpack.c.b16 %v304, %v302
        %v325 = vpack.c.b16 %v305, %v303
        %v326 = vpack.c.b16 %v308, %v306
        %v327 = vpack.c.b16 %v309, %v307
        %v328 = vpack.c.b16 %v312, %v310
        %v329 = vpack.c.b16 %v313, %v311
        %346 = vmatprep.subr.bf16.mxu0 %v315
        %347 = vmatpush1.bf16.msra.mxu0 %v314
        %348 = vmatprep.subr.bf16.mxu0 %v317
        %349 = vmatpush1.bf16.msra.mxu0 %v316
        %350 = vmatprep.subr.bf16.mxu0 %v319
        %351 = vmatpush1.bf16.msra.mxu0 %v318
        %352 = vmatprep.subr.bf16.mxu0 %v321
        %353 = vmatpush1.bf16.msra.mxu0 %v320
        %354 = vmatprep.subr.bf16.mxu0 %v323
        %355 = vmatpush1.bf16.msra.mxu0 %v322
        %356 = vmatprep.subr.bf16.mxu0 %v325
        %357 = vmatpush1.bf16.msra.mxu0 %v324
        %358 = vmatprep.subr.bf16.mxu0 %v327
        %359 = vmatpush1.bf16.msra.mxu0 %v326
        %360 = vmatprep.subr.bf16.mxu0 %v329
        %361 = vmatpush1.bf16.msra.mxu0 %v328
        %362 = vmatprep.subr.bf16.mxu0 0
        %363 = vmatpush1.bf16.msra.mxu0 0
        %364 = vmatprep.subr.bf16.mxu0 0
        %365 = vmatpush1.bf16.msra.mxu0 0
        %366 = vmatprep.subr.bf16.mxu0 0
        %367 = vmatpush1.bf16.msra.mxu0 0
        %368 = vmatprep.subr.bf16.mxu0 0
        %369 = vmatpush1.bf16.msra.mxu0 0
        %370 = vmatprep.subr.bf16.mxu0 0
        %371 = vmatpush1.bf16.msra.mxu0 0
        %372 = vmatprep.subr.bf16.mxu0 0
        %373 = vmatpush1.bf16.msra.mxu0 0
        %374 = vmatprep.subr.bf16.mxu0 0
        %375 = vmatpush1.bf16.msra.mxu0 0
        %376 = vmatprep.subr.bf16.mxu0 0
        %377 = vmatpush1.bf16.msra.mxu0 0
        %378 = vmatprep.mubr.bf16.mxu0 0
        %379 = vmatmul.mubr.bf16.gmra.mrb[0].mxu0 %v264
        %v380 = vpop.f32.mrb[0].mxu0
        %v381 = vadd.f32 %v253, %v380
        %v382 = vpop.f32.mrb[0].mxu0
        %v383 = vadd.f32 %v253, %v382
        %v384 = vpop.f32.mrb[0].mxu0
        %v385 = vadd.f32 %v258, %v384
        %v386 = vpop.f32.mrb[0].mxu0
        %v387 = vadd.f32 %v258, %v386
        %388 = vdwg.mxu0
        %v389 = vpack.c.bf16 %v385, %v381
        %v390 = vpack.c.bf16 %v387, %v383
        %v393 = vunpack.c.l.b16 %v389
        %v394 = vunpack.c.l.b16 %v390
        %v395 = vunpack.c.h.b16 %v389
        %v396 = vunpack.c.h.b16 %v390
        %v397 = vpack.c.b16 %v394, %v393
        %v398 = vpack.c.b16 %v396, %v395
        %401 = vst [vmem:[%s216] sm:$0xff] %v397
        %402 = vst [vmem:[%s216 + $0x8] sm:$0xff] %v398
        %v403 = vadd.f32 %v381, %v383
        %404 = vadd.xlane.f32.xlu0 %v403
        %v405 = vpop.xlane.xlu0 %404
        %v406 = vadd.f32 %v385, %v387
        %407 = vadd.xlane.f32.xlu0 %v406
        %v408 = vpop.xlane.xlu0 %407
        %v409 = vmul.f32 %v381, %v381
        %v410 = vmul.f32 %v383, %v383
        %v411 = vmul.f32 %v385, %v385
        %v412 = vmul.f32 %v387, %v387
        %v413 = vadd.f32 %v409, %v410
        %414 = vadd.xlane.f32.xlu0 %v413
        %v415 = vpop.xlane.xlu0 %414
        %v416 = vadd.f32 %v411, %v412
        %417 = vadd.xlane.f32.xlu0 %v416
        %v418 = vpop.xlane.xlu0 %417
        %vm419 = vcmask 7168
        %v420 = vsel %vm419, %v405, %v415
        %v421 = vsel %vm419, %v408, %v418
        %vm422 = vcmask 15360
        %423 = vst.msk [vmem:[%s228] sm:$0xff] %vm422, %v420
        %424 = vst.msk [vmem:[%s228 + $0x8] sm:$0xff] %vm422, %v421
        %s425 = sand.u32 %s98, 1
        %s426 = scalar_lea.sflag [#allocation4], %s425
        %s427 = sand.u32 %s98, 1
        %s428 = smul.addr %s427, 16
        %s429 = scalar_lea.vmem [#allocation5], %s428
        %p430 = scmp.lt.s32.totalorder %s22, 1
        %s431 = scalar_select %p430, %s22, 1
        %s432 = smul.addr %s431, 2
        %s433 = smul.addr %s432, 8
        %s434 = scalar_lea.vmem %s4, %s433
        // Predicated region
        $region37: #{tpu_custom_call.1} parent=31 // pred_check
          %p435 = pneg %p108
        $region38: #{tpu_custom_call.1} parent=31 // pred_check_branch
          %437 = sbr.rel (%p435) target = $region40
        $region39: #{tpu_custom_call.1} parent=31 // pred_region
          %s439 = ssub.s32 256, 256
          %440 = vsyncadd %s426, %s439
          %s441 = smul.addr %s22, 4
          %s442 = smul.addr %s441, 64
          %s443 = scalar_lea.hbm %s3, %s442
          %s444 = sshll.u32 %s429, 4
          %s445 = int_to_ptr.vmem [resolvable:$true] %s444
          %450 = dma.vmem_to_hbm [thread:$0]  %s445, 256, %s443, %s426, 128, 128, 8
        $region40: #{tpu_custom_call.1} parent=31 // pred_fallthru
          _
        // Predicated region
        $region41: #{tpu_custom_call.1} parent=31 // pred_check
          %p451 = pneg %p134
        $region42: #{tpu_custom_call.1} parent=31 // pred_check_branch
          %453 = sbr.rel (%p451) target = $region44
        $region43: #{tpu_custom_call.1} parent=31 // pred_region
          _
        $region44: #{tpu_custom_call.1} parent=31 // pred_fallthru
          _
      $region32: #{tpu_custom_call.1} parent=5 // pred_fallthru
        _
      %p454 = scmp.le.s32.totalorder 2, %s17
      // Predicated region
      $region45: #{tpu_custom_call.1} parent=5 // pred_check
        %p455 = pneg %p454
      $region46: #{tpu_custom_call.1} parent=5 // pred_check_branch
        %457 = sbr.rel (%p455) target = $region48
      $region47: #{tpu_custom_call.1} parent=5 // pred_region
        %s458 = ssub.s32 %s17, 2
        // Predicated region
        $region49: #{tpu_custom_call.1} parent=47 // pred_check
          %p459 = pneg %p114
        $region50: #{tpu_custom_call.1} parent=47 // pred_check_branch
          %461 = sbr.rel (%p459) target = $region52
        $region51: #{tpu_custom_call.1} parent=47 // pred_region
          %s462 = sand.u32 %s99, 1
          %s463 = scalar_lea.sflag [#allocation4], %s462
          %s464 = sand.u32 %s99, 1
          %s465 = smul.addr %s464, 16
          %s466 = scalar_lea.vmem [#allocation5], %s465
          %467 = dma.done %s463, 256
        $region52: #{tpu_custom_call.1} parent=47 // pred_fallthru
          _
        // Predicated region
        $region53: #{tpu_custom_call.1} parent=47 // pred_check
          %p468 = pneg %p140
        $region54: #{tpu_custom_call.1} parent=47 // pred_check_branch
          %470 = sbr.rel (%p468) target = $region56
        $region55: #{tpu_custom_call.1} parent=47 // pred_region
          %p471 = scmp.lt.s32.totalorder %s23, 1
          %s472 = scalar_select %p471, %s23, 1
          %s473 = smul.addr %s472, 2
          %s474 = smul.addr %s473, 8
          %s475 = scalar_lea.vmem %s4, %s474
        $region56: #{tpu_custom_call.1} parent=47 // pred_fallthru
          _
      $region48: #{tpu_custom_call.1} parent=5 // pred_fallthru
        _
    $region6: #{tpu_custom_call.1} parent=1 // loop_footer
      %s21 = sadd.s32 1, %s17
    $region7: #{tpu_custom_call.1} parent=1 // loop_footer_branch
      %16 = sbr.rel target = $region3
    $region8: #{tpu_custom_call.1} parent=1 // loop_exit
      _
    %476 = vsyncpa [#allocation3], 1
    %s477 = scalar_lea.sflag [#allocation3], 1
    %478 = vsyncpa %s477, 1
    %479 = vsyncpa [#allocation4], 1
    %s480 = scalar_lea.sflag [#allocation4], 1
    %481 = vsyncpa %s480, 1

</llo_original>
